<compile_context>
chip_gen: v5e
topology: v5e:2x2
jax: 0.10.0
libtpu: 0.0.40
codegen_flags: <defaults>
</compile_context>

<pallas_src>
import functools

import jax
import jax.numpy as jnp
import numpy as np
from jax import lax
from jax.experimental import pallas as pl
from jax.experimental.pallas import tpu as pltpu

# ---- model / problem sizes (small, TPU-tile friendly) ----
VOCAB = 256        # multiple of 128 (lane dim)
HIDDEN = 128
MAX_LEN = 32       # hard cap on sentence length (static shapes)
SEQ0 = 8           # initial prompt length
EOS = 198

# Exact 1/n lookup table (lives in SMEM): removes the reciprocal from the
# per-step serial chain; index 0 is unused (n >= 1 always).
_inv = np.ones((MAX_LEN,), np.float32)
_inv[1:] = 1.0 / np.arange(1, MAX_LEN, dtype=np.float32)
INV_LEN_TABLE = jnp.asarray(_inv)


def decode_kernel(prompt_ref, inv_ref, embw1_ref, b1_ref, w2_ref, b2_ref,
                  tok_out_ref, len_out_ref,
                  ctx_sum_ref, nxt_ref, state_ref, *, n0):
    """Fused greedy decode: weights stay VMEM-resident, loop runs in-kernel.

    ctx_sum_ref holds sum_over_tokens(embW1[token])  (W1-space running sum),
    so per step:  h = tanh(ctx_sum / n + b1);  logits = h @ W2 + b2.
    """
    # ---- prologue: copy prompt to output, build running W1-space sum ------
    ctx_sum_ref[...] = jnp.zeros_like(ctx_sum_ref)
    for i in range(n0):                      # n0 is static -> fully unrolled
        t = prompt_ref[i]
        tok_out_ref[i] = t
        ctx_sum_ref[...] = ctx_sum_ref[...] + embw1_ref[pl.ds(t, 1), :]

    state_ref[0] = jnp.int32(n0)                           # current length
    state_ref[1] = jnp.int32(1 if n0 >= MAX_LEN else 0)    # done flag

    # ---- greedy decode loop (at most MAX_LEN - n0 steps, gated by done) ---
    @pl.loop(0, MAX_LEN - n0)
    def _(step):
        @pl.when(state_ref[1] == 0)
        def _():
            n = n0 + step                       # current length (scalar)
            inv_n = inv_ref[n]                  # exact 1/n from SMEM table

            # mean-pooled context already in W1-space -> tanh -> vocab logits
            h = jnp.tanh(ctx_sum_ref[...] * inv_n + b1_ref[...])
            logits = jnp.dot(h.astype(w2_ref.dtype), w2_ref[...],
                             preferred_element_type=jnp.float32) + b2_ref[...]

            # argmax over vocab: first-max index (torch.argmax tie-breaking)
            m = jnp.max(logits, axis=-1, keepdims=True)
            ids = lax.broadcasted_iota(jnp.int32, logits.shape, 1)
            idx = jnp.min(jnp.where(logits == m, ids, VOCAB),
                          axis=-1, keepdims=True)            # (1, 1) int32
            nxt_ref[...] = idx.astype(jnp.int32)

            # scalar work independent of the new token id, overlapped with
            # the vector-store -> scalar-load roundtrip below
            n1 = n + 1
            state_ref[0] = n1
            cap_hit = n1 >= MAX_LEN

            # vector -> scalar handoff; only these depend on the token value
            nxt = nxt_ref[0, 0]
            tok_out_ref[n] = nxt
            ctx_sum_ref[...] = ctx_sum_ref[...] + embw1_ref[pl.ds(nxt, 1), :]
            state_ref[1] = jnp.logical_or(nxt == EOS, cap_hit).astype(jnp.int32)

    len_out_ref[0] = state_ref[0]


@jax.jit
def finish_my_sentence(prompt_tokens, params):
    """Greedy decode: append argmax next-token until EOS (or MAX_LEN cap)."""
    embw1, b1, w2, b2 = params
    n0 = prompt_tokens.shape[0]
    # TODO(synk): PyTorch loop is unbounded; static shapes force a MAX_LEN cap.
    if not (1 <= n0 < MAX_LEN):
        raise ValueError(f"prompt length must be in [1, {MAX_LEN}), got {n0}")

    tokens, length = pl.pallas_call(
        functools.partial(decode_kernel, n0=n0),
        out_shape=(jax.ShapeDtypeStruct((MAX_LEN,), jnp.int32),
                   jax.ShapeDtypeStruct((1,), jnp.int32)),
        in_specs=[
            pl.BlockSpec(memory_space=pltpu.MemorySpace.SMEM),   # prompt
            pl.BlockSpec(memory_space=pltpu.MemorySpace.SMEM),   # 1/n table
            pl.BlockSpec(memory_space=pltpu.MemorySpace.VMEM),   # embW1 (f32)
            pl.BlockSpec(memory_space=pltpu.MemorySpace.VMEM),   # b1
            pl.BlockSpec(memory_space=pltpu.MemorySpace.VMEM),   # W2 (bf16)
            pl.BlockSpec(memory_space=pltpu.MemorySpace.VMEM),   # b2
        ],
        out_specs=(pl.BlockSpec(memory_space=pltpu.MemorySpace.SMEM),  # tokens
                   pl.BlockSpec(memory_space=pltpu.MemorySpace.SMEM)), # length
        scratch_shapes=[
            pltpu.VMEM((1, HIDDEN), jnp.float32),   # running W1-space sum
            pltpu.VMEM((1, 1), jnp.int32),          # next-token staging
            pltpu.SMEM((2,), jnp.int32),            # [cur_len, done]
        ],
    )(prompt_tokens.astype(jnp.int32), INV_LEN_TABLE, embw1, b1, w2, b2)
    return tokens, length[0]


def make_params(key):
    """Raw synthetic next-token-predictor parameters."""
    k1, k2, k3 = jax.random.split(key, 3)
    emb = jax.random.normal(k1, (VOCAB, HIDDEN), jnp.float32) * 0.5
    w1 = jax.random.normal(k2, (HIDDEN, HIDDEN), jnp.float32) * 0.1
    b1 = jnp.zeros((1, HIDDEN), jnp.float32)
    w2 = jax.random.normal(k3, (HIDDEN, VOCAB), jnp.float32) * 0.1
    b2 = jnp.zeros((1, VOCAB), jnp.float32)
    return emb, w1, b1, w2, b2


def fold_params(params):
    """One-time fold: embW1 = emb @ W1 (f32); W2 kept bf16 for the MXU."""
    emb, w1, b1, w2, b2 = params
    embw1 = jnp.dot(emb, w1, preferred_element_type=jnp.float32)  # (VOCAB, HIDDEN)
    return embw1, b1, w2.astype(jnp.bfloat16), b2


if __name__ == "__main__":
    key = jax.random.PRNGKey(0)
    kp, kx = jax.random.split(key)
    params = fold_params(make_params(kp))
    # initial sentence: SEQ0 random token ids
    prompt = jax.random.randint(kx, (SEQ0,), 0, VOCAB, dtype=jnp.int32)

    tokens, length = finish_my_sentence(prompt, params)
    jax.block_until_ready((tokens, length))

    n = int(length)
    sentence = tokens[:n]
    assert n > SEQ0, "decoder must have produced at least one token"
    assert bool(jnp.all(sentence[:SEQ0] == prompt)), "prompt must be preserved"
    assert n <= MAX_LEN
    print("KERNEL_OK")
</pallas_src>

<mosaic_0001>
module attributes {stable_mosaic.version = 11 : i64} {
  func.func @decode_kernel(%arg0: memref<8xi32, #tpu.memory_space<smem>>, %arg1: memref<32xf32, #tpu.memory_space<smem>>, %arg2: memref<256x128xf32, #tpu.memory_space<vmem>>, %arg3: memref<1x128xf32, #tpu.memory_space<vmem>>, %arg4: memref<128x256xbf16, #tpu.memory_space<vmem>>, %arg5: memref<1x256xf32, #tpu.memory_space<vmem>>, %arg6: memref<32xi32, #tpu.memory_space<smem>>, %arg7: memref<1xi32, #tpu.memory_space<smem>>, %arg8: memref<1x128xf32, #tpu.memory_space<vmem>>, %arg9: memref<1x1xi32, #tpu.memory_space<vmem>>, %arg10: memref<2xi32, #tpu.memory_space<smem>>) attributes {dimension_semantics = [], scalar_prefetch = 0 : i64, scratch_operands = 3 : i64, tpu.core_type = #tpu.core_type<tc>} {
    %cst = arith.constant 0.000000e+00 : f32
    %0 = vector.broadcast %cst : f32 to vector<1x128xf32>
    %c0 = arith.constant 0 : index
    %c0_0 = arith.constant 0 : index
    %1 = vector.load %arg8[%c0, %c0_0] : memref<1x128xf32, #tpu.memory_space<vmem>>, vector<1x128xf32>
    tpu.vector_store %arg8[%c0, %c0_0], %0 {strides = array<i32>} : memref<1x128xf32, #tpu.memory_space<vmem>>, vector<1x128xf32>,
    %c0_1 = arith.constant 0 : index
    %2 = memref.load %arg0[%c0_1] : memref<8xi32, #tpu.memory_space<smem>>
    %c0_2 = arith.constant 0 : index
    %3 = memref.load %arg6[%c0_2] : memref<32xi32, #tpu.memory_space<smem>>
    memref.store %2, %arg6[%c0_2] : memref<32xi32, #tpu.memory_space<smem>>
    %c0_3 = arith.constant 0 : index
    %c0_4 = arith.constant 0 : index
    %4 = vector.load %arg8[%c0_3, %c0_4] : memref<1x128xf32, #tpu.memory_space<vmem>>, vector<1x128xf32>
    %5 = arith.index_cast %2 : i32 to index
    %c0_5 = arith.constant 0 : index
    %6 = vector.load %arg2[%5, %c0_5] : memref<256x128xf32, #tpu.memory_space<vmem>>, vector<1x128xf32>
    %7 = arith.addf %4, %6 : vector<1x128xf32>
    %c0_6 = arith.constant 0 : index
    %c0_7 = arith.constant 0 : index
    %8 = vector.load %arg8[%c0_6, %c0_7] : memref<1x128xf32, #tpu.memory_space<vmem>>, vector<1x128xf32>
    tpu.vector_store %arg8[%c0_6, %c0_7], %7 {strides = array<i32>} : memref<1x128xf32, #tpu.memory_space<vmem>>, vector<1x128xf32>,
    %c1 = arith.constant 1 : index
    %9 = memref.load %arg0[%c1] : memref<8xi32, #tpu.memory_space<smem>>
    %c1_8 = arith.constant 1 : index
    %10 = memref.load %arg6[%c1_8] : memref<32xi32, #tpu.memory_space<smem>>
    memref.store %9, %arg6[%c1_8] : memref<32xi32, #tpu.memory_space<smem>>
    %c0_9 = arith.constant 0 : index
    %c0_10 = arith.constant 0 : index
    %11 = vector.load %arg8[%c0_9, %c0_10] : memref<1x128xf32, #tpu.memory_space<vmem>>, vector<1x128xf32>
    %12 = arith.index_cast %9 : i32 to index
    %c0_11 = arith.constant 0 : index
    %13 = vector.load %arg2[%12, %c0_11] : memref<256x128xf32, #tpu.memory_space<vmem>>, vector<1x128xf32>
    %14 = arith.addf %11, %13 : vector<1x128xf32>
    %c0_12 = arith.constant 0 : index
    %c0_13 = arith.constant 0 : index
    %15 = vector.load %arg8[%c0_12, %c0_13] : memref<1x128xf32, #tpu.memory_space<vmem>>, vector<1x128xf32>
    tpu.vector_store %arg8[%c0_12, %c0_13], %14 {strides = array<i32>} : memref<1x128xf32, #tpu.memory_space<vmem>>, vector<1x128xf32>,
    %c2 = arith.constant 2 : index
    %16 = memref.load %arg0[%c2] : memref<8xi32, #tpu.memory_space<smem>>
    %c2_14 = arith.constant 2 : index
    %17 = memref.load %arg6[%c2_14] : memref<32xi32, #tpu.memory_space<smem>>
    memref.store %16, %arg6[%c2_14] : memref<32xi32, #tpu.memory_space<smem>>
    %c0_15 = arith.constant 0 : index
    %c0_16 = arith.constant 0 : index
    %18 = vector.load %arg8[%c0_15, %c0_16] : memref<1x128xf32, #tpu.memory_space<vmem>>, vector<1x128xf32>
    %19 = arith.index_cast %16 : i32 to index
    %c0_17 = arith.constant 0 : index
    %20 = vector.load %arg2[%19, %c0_17] : memref<256x128xf32, #tpu.memory_space<vmem>>, vector<1x128xf32>
    %21 = arith.addf %18, %20 : vector<1x128xf32>
    %c0_18 = arith.constant 0 : index
    %c0_19 = arith.constant 0 : index
    %22 = vector.load %arg8[%c0_18, %c0_19] : memref<1x128xf32, #tpu.memory_space<vmem>>, vector<1x128xf32>
    tpu.vector_store %arg8[%c0_18, %c0_19], %21 {strides = array<i32>} : memref<1x128xf32, #tpu.memory_space<vmem>>, vector<1x128xf32>,
    %c3 = arith.constant 3 : index
    %23 = memref.load %arg0[%c3] : memref<8xi32, #tpu.memory_space<smem>>
    %c3_20 = arith.constant 3 : index
    %24 = memref.load %arg6[%c3_20] : memref<32xi32, #tpu.memory_space<smem>>
    memref.store %23, %arg6[%c3_20] : memref<32xi32, #tpu.memory_space<smem>>
    %c0_21 = arith.constant 0 : index
    %c0_22 = arith.constant 0 : index
    %25 = vector.load %arg8[%c0_21, %c0_22] : memref<1x128xf32, #tpu.memory_space<vmem>>, vector<1x128xf32>
    %26 = arith.index_cast %23 : i32 to index
    %c0_23 = arith.constant 0 : index
    %27 = vector.load %arg2[%26, %c0_23] : memref<256x128xf32, #tpu.memory_space<vmem>>, vector<1x128xf32>
    %28 = arith.addf %25, %27 : vector<1x128xf32>
    %c0_24 = arith.constant 0 : index
    %c0_25 = arith.constant 0 : index
    %29 = vector.load %arg8[%c0_24, %c0_25] : memref<1x128xf32, #tpu.memory_space<vmem>>, vector<1x128xf32>
    tpu.vector_store %arg8[%c0_24, %c0_25], %28 {strides = array<i32>} : memref<1x128xf32, #tpu.memory_space<vmem>>, vector<1x128xf32>,
    %c4 = arith.constant 4 : index
    %30 = memref.load %arg0[%c4] : memref<8xi32, #tpu.memory_space<smem>>
    %c4_26 = arith.constant 4 : index
    %31 = memref.load %arg6[%c4_26] : memref<32xi32, #tpu.memory_space<smem>>
    memref.store %30, %arg6[%c4_26] : memref<32xi32, #tpu.memory_space<smem>>
    %c0_27 = arith.constant 0 : index
    %c0_28 = arith.constant 0 : index
    %32 = vector.load %arg8[%c0_27, %c0_28] : memref<1x128xf32, #tpu.memory_space<vmem>>, vector<1x128xf32>
    %33 = arith.index_cast %30 : i32 to index
    %c0_29 = arith.constant 0 : index
    %34 = vector.load %arg2[%33, %c0_29] : memref<256x128xf32, #tpu.memory_space<vmem>>, vector<1x128xf32>
    %35 = arith.addf %32, %34 : vector<1x128xf32>
    %c0_30 = arith.constant 0 : index
    %c0_31 = arith.constant 0 : index
    %36 = vector.load %arg8[%c0_30, %c0_31] : memref<1x128xf32, #tpu.memory_space<vmem>>, vector<1x128xf32>
    tpu.vector_store %arg8[%c0_30, %c0_31], %35 {strides = array<i32>} : memref<1x128xf32, #tpu.memory_space<vmem>>, vector<1x128xf32>,
    %c5 = arith.constant 5 : index
    %37 = memref.load %arg0[%c5] : memref<8xi32, #tpu.memory_space<smem>>
    %c5_32 = arith.constant 5 : index
    %38 = memref.load %arg6[%c5_32] : memref<32xi32, #tpu.memory_space<smem>>
    memref.store %37, %arg6[%c5_32] : memref<32xi32, #tpu.memory_space<smem>>
    %c0_33 = arith.constant 0 : index
    %c0_34 = arith.constant 0 : index
    %39 = vector.load %arg8[%c0_33, %c0_34] : memref<1x128xf32, #tpu.memory_space<vmem>>, vector<1x128xf32>
    %40 = arith.index_cast %37 : i32 to index
    %c0_35 = arith.constant 0 : index
    %41 = vector.load %arg2[%40, %c0_35] : memref<256x128xf32, #tpu.memory_space<vmem>>, vector<1x128xf32>
    %42 = arith.addf %39, %41 : vector<1x128xf32>
    %c0_36 = arith.constant 0 : index
    %c0_37 = arith.constant 0 : index
    %43 = vector.load %arg8[%c0_36, %c0_37] : memref<1x128xf32, #tpu.memory_space<vmem>>, vector<1x128xf32>
    tpu.vector_store %arg8[%c0_36, %c0_37], %42 {strides = array<i32>} : memref<1x128xf32, #tpu.memory_space<vmem>>, vector<1x128xf32>,
    %c6 = arith.constant 6 : index
    %44 = memref.load %arg0[%c6] : memref<8xi32, #tpu.memory_space<smem>>
    %c6_38 = arith.constant 6 : index
    %45 = memref.load %arg6[%c6_38] : memref<32xi32, #tpu.memory_space<smem>>
    memref.store %44, %arg6[%c6_38] : memref<32xi32, #tpu.memory_space<smem>>
    %c0_39 = arith.constant 0 : index
    %c0_40 = arith.constant 0 : index
    %46 = vector.load %arg8[%c0_39, %c0_40] : memref<1x128xf32, #tpu.memory_space<vmem>>, vector<1x128xf32>
    %47 = arith.index_cast %44 : i32 to index
    %c0_41 = arith.constant 0 : index
    %48 = vector.load %arg2[%47, %c0_41] : memref<256x128xf32, #tpu.memory_space<vmem>>, vector<1x128xf32>
    %49 = arith.addf %46, %48 : vector<1x128xf32>
    %c0_42 = arith.constant 0 : index
    %c0_43 = arith.constant 0 : index
    %50 = vector.load %arg8[%c0_42, %c0_43] : memref<1x128xf32, #tpu.memory_space<vmem>>, vector<1x128xf32>
    tpu.vector_store %arg8[%c0_42, %c0_43], %49 {strides = array<i32>} : memref<1x128xf32, #tpu.memory_space<vmem>>, vector<1x128xf32>,
    %c7 = arith.constant 7 : index
    %51 = memref.load %arg0[%c7] : memref<8xi32, #tpu.memory_space<smem>>
    %c7_44 = arith.constant 7 : index
    %52 = memref.load %arg6[%c7_44] : memref<32xi32, #tpu.memory_space<smem>>
    memref.store %51, %arg6[%c7_44] : memref<32xi32, #tpu.memory_space<smem>>
    %c0_45 = arith.constant 0 : index
    %c0_46 = arith.constant 0 : index
    %53 = vector.load %arg8[%c0_45, %c0_46] : memref<1x128xf32, #tpu.memory_space<vmem>>, vector<1x128xf32>
    %54 = arith.index_cast %51 : i32 to index
    %c0_47 = arith.constant 0 : index
    %55 = vector.load %arg2[%54, %c0_47] : memref<256x128xf32, #tpu.memory_space<vmem>>, vector<1x128xf32>
    %56 = arith.addf %53, %55 : vector<1x128xf32>
    %c0_48 = arith.constant 0 : index
    %c0_49 = arith.constant 0 : index
    %57 = vector.load %arg8[%c0_48, %c0_49] : memref<1x128xf32, #tpu.memory_space<vmem>>, vector<1x128xf32>
    tpu.vector_store %arg8[%c0_48, %c0_49], %56 {strides = array<i32>} : memref<1x128xf32, #tpu.memory_space<vmem>>, vector<1x128xf32>,
    %c8_i32 = arith.constant 8 : i32
    %c0_50 = arith.constant 0 : index
    %58 = memref.load %arg10[%c0_50] : memref<2xi32, #tpu.memory_space<smem>>
    memref.store %c8_i32, %arg10[%c0_50] : memref<2xi32, #tpu.memory_space<smem>>
    %c0_i32 = arith.constant 0 : i32
    %c1_51 = arith.constant 1 : index
    %59 = memref.load %arg10[%c1_51] : memref<2xi32, #tpu.memory_space<smem>>
    memref.store %c0_i32, %arg10[%c1_51] : memref<2xi32, #tpu.memory_space<smem>>
    %c0_i32_52 = arith.constant 0 : i32
    %c24_i32 = arith.constant 24 : i32
    %60 = arith.addi %c0_i32_52, %c24_i32 : i32
    %c1_i32 = arith.constant 1 : i32
    scf.for %arg11 = %c0_i32_52 to %60 step %c1_i32  : i32 {
      %c1_i32_56 = arith.constant 1 : i32
      %63 = arith.muli %arg11, %c1_i32_56 : i32
      %c0_i32_57 = arith.constant 0 : i32
      %64 = arith.addi %c0_i32_57, %63 : i32
      %c1_58 = arith.constant 1 : index
      %65 = memref.load %arg10[%c1_58] : memref<2xi32, #tpu.memory_space<smem>>
      %c0_i32_59 = arith.constant 0 : i32
      %66 = arith.cmpi eq, %65, %c0_i32_59 : i32
      %67 = arith.extui %66 : i1 to i32
      %c0_i32_60 = arith.constant 0 : i32
      %68 = arith.cmpi ne, %67, %c0_i32_60 : i32
      scf.if %68 {
        %c8_i32_61 = arith.constant 8 : i32
        %69 = arith.addi %c8_i32_61, %64 : i32
        %70 = arith.index_cast %69 : i32 to index
        %71 = memref.load %arg1[%70] : memref<32xf32, #tpu.memory_space<smem>>
        %c0_62 = arith.constant 0 : index
        %c0_63 = arith.constant 0 : index
        %72 = vector.load %arg8[%c0_62, %c0_63] : memref<1x128xf32, #tpu.memory_space<vmem>>, vector<1x128xf32>
        %73 = vector.broadcast %71 : f32 to vector<1x128xf32>
        %74 = arith.mulf %72, %73 : vector<1x128xf32>
        %c0_64 = arith.constant 0 : index
        %c0_65 = arith.constant 0 : index
        %75 = vector.load %arg3[%c0_64, %c0_65] : memref<1x128xf32, #tpu.memory_space<vmem>>, vector<1x128xf32>
        %76 = arith.addf %74, %75 : vector<1x128xf32>
        %77 = math.tanh %76 : vector<1x128xf32>
        %78 = arith.truncf %77 : vector<1x128xf32> to vector<1x128xbf16>
        %c0_66 = arith.constant 0 : index
        %c0_67 = arith.constant 0 : index
        %79 = vector.load %arg4[%c0_66, %c0_67] : memref<128x256xbf16, #tpu.memory_space<vmem>>, vector<128x256xbf16>
        %cst_68 = arith.constant dense<0.000000e+00> : vector<1x256xf32>
        %80 = tpu.matmul %78, %79, %cst_68 {dimension_numbers = #tpu.dot_dimension_numbers<[1], [0], [0], [1], [0, 0, 1, 1], [], []>} : vector<1x128xbf16>, vector<128x256xbf16>, vector<1x256xf32> -> vector<1x256xf32>
        %c0_69 = arith.constant 0 : index
        %c0_70 = arith.constant 0 : index
        %81 = vector.load %arg5[%c0_69, %c0_70] : memref<1x256xf32, #tpu.memory_space<vmem>>, vector<1x256xf32>
        %82 = arith.addf %80, %81 : vector<1x256xf32>
        %cst_71 = arith.constant dense<0xFF800000> : vector<1xf32>
        %83 = vector.multi_reduction <maximumf>, %82, %cst_71 [1] : vector<1x256xf32> to vector<1xf32>
        %84 = vector.shape_cast %83 : vector<1xf32> to vector<1x1xf32>
        %85 = tpu.iota {dimensions = array<i32: 1>} : vector<1x256xi32>
        %86 = vector.broadcast %84 : vector<1x1xf32> to vector<1x256xf32>
        %87 = arith.cmpf oeq, %82, %86 : vector<1x256xf32>
        %c256_i32 = arith.constant 256 : i32
        %88 = vector.broadcast %c256_i32 : i32 to vector<1x256xi32>
        %89 = arith.select %87, %85, %88 : vector<1x256xi1>, vector<1x256xi32>
        %cst_72 = arith.constant dense<2147483647> : vector<1xi32>
        %90 = vector.multi_reduction <minsi>, %89, %cst_72 [1] : vector<1x256xi32> to vector<1xi32>
        %91 = vector.shape_cast %90 : vector<1xi32> to vector<1x1xi32>
        %c0_73 = arith.constant 0 : index
        %c0_74 = arith.constant 0 : index
        %92 = vector.load %arg9[%c0_73, %c0_74] : memref<1x1xi32, #tpu.memory_space<vmem>>, vector<1x1xi32>
        tpu.vector_store %arg9[%c0_73, %c0_74], %91 {strides = array<i32>} : memref<1x1xi32, #tpu.memory_space<vmem>>, vector<1x1xi32>,
        %c1_i32_75 = arith.constant 1 : i32
        %93 = arith.addi %69, %c1_i32_75 : i32
        %c0_76 = arith.constant 0 : index
        %94 = memref.load %arg10[%c0_76] : memref<2xi32, #tpu.memory_space<smem>>
        memref.store %93, %arg10[%c0_76] : memref<2xi32, #tpu.memory_space<smem>>
        %c32_i32 = arith.constant 32 : i32
        %95 = arith.cmpi sge, %93, %c32_i32 : i32
        %c0_77 = arith.constant 0 : index
        %c0_78 = arith.constant 0 : index
        %96 = vector.load %arg9[%c0_77, %c0_78] : memref<1x1xi32, #tpu.memory_space<vmem>>, vector<1x1xi32>
        %97 = vector.extract %96[0, 0] : i32 from vector<1x1xi32>
        %98 = arith.index_cast %69 : i32 to index
        %99 = memref.load %arg6[%98] : memref<32xi32, #tpu.memory_space<smem>>
        memref.store %97, %arg6[%98] : memref<32xi32, #tpu.memory_space<smem>>
        %c0_79 = arith.constant 0 : index
        %c0_80 = arith.constant 0 : index
        %100 = vector.load %arg8[%c0_79, %c0_80] : memref<1x128xf32, #tpu.memory_space<vmem>>, vector<1x128xf32>
        %101 = arith.index_cast %97 : i32 to index
        %c0_81 = arith.constant 0 : index
        %102 = vector.load %arg2[%101, %c0_81] : memref<256x128xf32, #tpu.memory_space<vmem>>, vector<1x128xf32>
        %103 = arith.addf %100, %102 : vector<1x128xf32>
        %c0_82 = arith.constant 0 : index
        %c0_83 = arith.constant 0 : index
        %104 = vector.load %arg8[%c0_82, %c0_83] : memref<1x128xf32, #tpu.memory_space<vmem>>, vector<1x128xf32>
        tpu.vector_store %arg8[%c0_82, %c0_83], %103 {strides = array<i32>} : memref<1x128xf32, #tpu.memory_space<vmem>>, vector<1x128xf32>,
        %c198_i32 = arith.constant 198 : i32
        %105 = arith.cmpi eq, %97, %c198_i32 : i32
        %106 = arith.ori %105, %95 : i1
        %107 = arith.extui %106 : i1 to i32
        %c1_84 = arith.constant 1 : index
        %108 = memref.load %arg10[%c1_84] : memref<2xi32, #tpu.memory_space<smem>>
        memref.store %107, %arg10[%c1_84] : memref<2xi32, #tpu.memory_space<smem>>
      } else {
      }
    }
    %c24_i32_53 = arith.constant 24 : i32
    %c0_54 = arith.constant 0 : index
    %61 = memref.load %arg10[%c0_54] : memref<2xi32, #tpu.memory_space<smem>>
    %c0_55 = arith.constant 0 : index
    %62 = memref.load %arg7[%c0_55] : memref<1xi32, #tpu.memory_space<smem>>
    memref.store %61, %arg7[%c0_55] : memref<1xi32, #tpu.memory_space<smem>>
    return
  }
}

</mosaic_0001>

<llo_original>
// kernel: finish_my_sentence.1
$region0: #{finish_my_sentence.1}
  #allocation0 [shape = 'u32[]', space=smem, size = 0x4, offset = 0x4, fixed_abs, tag = 'smem constant byte address 0x4 - core index']
  #allocation1 [shape = 'u32[72,128]{1,0:T(1,128)}', space=vmem, size = 0x9000, scoped, tag = 'internal scratch']
  #allocation2 [shape = 'f32[1,128]{1,0:T(1,128)}', space=vmem, size = 0x200, scoped, tag = 'scratch operand']
  #allocation3 [shape = 's32[1,1]{1,0:T(1,128)}', space=vmem, size = 0x200, scoped, tag = 'scratch operand']
  #allocation4 [shape = 's32[2]{0:T(128)}', space=smem, size = 0x200, scoped, tag = 'scratch operand']
  %s0 = inlined_call_operand.hbm [shape: s32[8], index: 0, kind: input, shape index: {}]
  %s1 = inlined_call_operand.vmem [shape: f32[32], index: 1, kind: input, shape index: {}]
  %s2 = inlined_call_operand.hbm [shape: f32[256,128], index: 2, kind: input, shape index: {}]
  %s3 = inlined_call_operand.vmem [shape: f32[1,128], index: 3, kind: input, shape index: {}]
  %s4 = inlined_call_operand.hbm [shape: bf16[128,256], index: 4, kind: input, shape index: {}]
  %s5 = inlined_call_operand.vmem [shape: f32[1,256], index: 5, kind: input, shape index: {}]
  %s6 = inlined_call_operand.hbm [shape: s32[32], index: 6, kind: output, shape index: {0}]
  %s7 = inlined_call_operand.hbm [shape: s32[1], index: 7, kind: output, shape index: {1}]
  %8 = xla_tuple %s6, %s7
  %s9 = sld [smem:[#allocation0]]
  $region69: #{finish_my_sentence.1} parent=0
    _
  %s11 = ssub.s32 1, %s9
  %s12 = scalar_select 0, %s11, %s9
  $region1: #{finish_my_sentence.1} parent=0
    #allocation5 [shape = 'u8[512]{0}', space=smem, size = 0x200, scoped, tag = 'input window, operand 0, single buffered']
    #allocation6 [shape = 's32[1]{0}', space=sflag, size = 0x4, scoped, tag = 'scoped memory for finish_my_sentence.1']
    #allocation7 [shape = 's32[1]{0}', space=sflag, size = 0x4, scoped, tag = 'scoped memory for finish_my_sentence.1']
    #allocation8 [shape = 's32[1]{0}', space=sflag, size = 0x4, scoped, tag = 'scoped memory for finish_my_sentence.1']
    #allocation9 [shape = 's32[1]{0}', space=sflag, size = 0x4, scoped, tag = 'scoped memory for finish_my_sentence.1']
    #allocation10 [shape = 'u8[512]{0}', space=smem, size = 0x200, scoped, tag = 'input window, operand 1, single buffered']
    #allocation11 [shape = 'u8[131072]{0}', space=vmem, size = 0x20000, scoped, tag = 'input window, operand 2, single buffered']
    #allocation12 [shape = 'u8[65536]{0}', space=vmem, size = 0x10000, scoped, tag = 'input window, operand 4, single buffered']
    #allocation13 [shape = 's32[1]{0}', space=sflag, size = 0x4, scoped, tag = 'scoped memory for finish_my_sentence.1']
    #allocation14 [shape = 'u8[512]{0}', space=smem, size = 0x200, scoped, tag = 'output window, operand 0, single buffered']
    #allocation15 [shape = 'u8[512]{0}', space=smem, size = 0x200, scoped, tag = 'output window, operand 1, single buffered']
    #allocation16 [shape = 's32[1]{0}', space=sflag, size = 0x4, scoped, tag = 'scoped memory for finish_my_sentence.1']
    %13 = vsyncpa [#allocation7], 0
    %14 = vsyncpa [#allocation9], 0
    %15 = vsyncpa [#allocation6], 0
    %16 = vsyncpa [#allocation13], 0
    %17 = vsyncpa [#allocation8], 0
    %18 = vsyncpa [#allocation16], 0
    // Predicated region
    $region2: #{finish_my_sentence.1} parent=1 // pred_check
      _
    $region3: #{finish_my_sentence.1} parent=1 // pred_check_branch
      %20 = sbr.rel (0) target = $region5
    $region4: #{finish_my_sentence.1} parent=1 // pred_region
      %22 = vsyncadd [#allocation7], 0
      %s24 = sshll.u32 %s0, 4
      %s25 = int_to_ptr.hbm [resolvable:$true] %s24
      %27 = dma.hbm_to_smem %s25, 16, [#allocation5], [#allocation7]
    $region5: #{finish_my_sentence.1} parent=1 // pred_fallthru
      _
    // Predicated region
    $region6: #{finish_my_sentence.1} parent=1 // pred_check
      _
    $region7: #{finish_my_sentence.1} parent=1 // pred_check_branch
      %29 = sbr.rel (0) target = $region9
    $region8: #{finish_my_sentence.1} parent=1 // pred_region
      %31 = vsyncadd [#allocation9], 0
      %s33 = sshll.u32 %s1, 4
      %s34 = int_to_ptr.vmem [resolvable:$true] %s33
      %36 = dma.vmem_to_smem %s34, 16, [#allocation10], [#allocation9]
    $region9: #{finish_my_sentence.1} parent=1 // pred_fallthru
      _
    // Predicated region
    $region10: #{finish_my_sentence.1} parent=1 // pred_check
      _
    $region11: #{finish_my_sentence.1} parent=1 // pred_check_branch
      %38 = sbr.rel (0) target = $region13
    $region12: #{finish_my_sentence.1} parent=1 // pred_region
      %40 = vsyncadd [#allocation6], 0
      %s41 = sshll.u32 %s2, 4
      %s42 = int_to_ptr.hbm [resolvable:$true] %s41
      %s43 = sshll.u32 [#allocation11], 4
      %s44 = int_to_ptr.vmem [resolvable:$true] %s43
      %49 = dma.hbm_to_vmem [thread:$0]  %s42, 4096, %s44, [#allocation6], 128, 128, 8
    $region13: #{finish_my_sentence.1} parent=1 // pred_fallthru
      _
    // Predicated region
    $region14: #{finish_my_sentence.1} parent=1 // pred_check
      _
    $region15: #{finish_my_sentence.1} parent=1 // pred_check_branch
      %51 = sbr.rel (0) target = $region17
    $region16: #{finish_my_sentence.1} parent=1 // pred_region
      _
    $region17: #{finish_my_sentence.1} parent=1 // pred_fallthru
      _
    // Predicated region
    $region18: #{finish_my_sentence.1} parent=1 // pred_check
      _
    $region19: #{finish_my_sentence.1} parent=1 // pred_check_branch
      %53 = sbr.rel (0) target = $region21
    $region20: #{finish_my_sentence.1} parent=1 // pred_region
      %55 = vsyncadd [#allocation13], 0
      %s56 = sshll.u32 %s4, 4
      %s57 = int_to_ptr.hbm [resolvable:$true] %s56
      %s58 = sshll.u32 [#allocation12], 4
      %s59 = int_to_ptr.vmem [resolvable:$true] %s58
      %64 = dma.hbm_to_vmem [thread:$0]  %s57, 2048, %s59, [#allocation13], 128, 128, 8
    $region21: #{finish_my_sentence.1} parent=1 // pred_fallthru
      _
    // Predicated region
    $region22: #{finish_my_sentence.1} parent=1 // pred_check
      _
    $region23: #{finish_my_sentence.1} parent=1 // pred_check_branch
      %66 = sbr.rel (0) target = $region25
    $region24: #{finish_my_sentence.1} parent=1 // pred_region
      _
    $region25: #{finish_my_sentence.1} parent=1 // pred_fallthru
      _
    // Predicated region
    $region26: #{finish_my_sentence.1} parent=1 // pred_check
      _
    $region27: #{finish_my_sentence.1} parent=1 // pred_check_branch
      %68 = sbr.rel (0) target = $region29
    $region28: #{finish_my_sentence.1} parent=1 // pred_region
      %70 = dma.done [#allocation7], 16
    $region29: #{finish_my_sentence.1} parent=1 // pred_fallthru
      _
    // Predicated region
    $region30: #{finish_my_sentence.1} parent=1 // pred_check
      _
    $region31: #{finish_my_sentence.1} parent=1 // pred_check_branch
      %72 = sbr.rel (0) target = $region33
    $region32: #{finish_my_sentence.1} parent=1 // pred_region
      %74 = dma.done [#allocation9], 16
    $region33: #{finish_my_sentence.1} parent=1 // pred_fallthru
      _
    // Predicated region
    $region34: #{finish_my_sentence.1} parent=1 // pred_check
      _
    $region35: #{finish_my_sentence.1} parent=1 // pred_check_branch
      %76 = sbr.rel (0) target = $region37
    $region36: #{finish_my_sentence.1} parent=1 // pred_region
      %78 = dma.done [#allocation6], 4096
    $region37: #{finish_my_sentence.1} parent=1 // pred_fallthru
      _
    // Predicated region
    $region38: #{finish_my_sentence.1} parent=1 // pred_check
      _
    $region39: #{finish_my_sentence.1} parent=1 // pred_check_branch
      %80 = sbr.rel (0) target = $region41
    $region40: #{finish_my_sentence.1} parent=1 // pred_region
      %82 = dma.done [#allocation13], 2048
    $region41: #{finish_my_sentence.1} parent=1 // pred_fallthru
      _
    %83 = sfence
    %84 = vst [vmem:[#allocation2] sm:$0x1] 0.0
    %s85 = sld [smem:[#allocation5]]
    %s86 = scalar_lea.smem [#allocation14], 0
    %87 = sst [smem:[%s86]] %s85
    %v88 = vld [vmem:[#allocation2] sm:$0x1]
    %s89 = scalar_lea.vmem [#allocation11], %s85
    %v90 = vld [vmem:[%s89] sm:$0x1]
    %v91 = vadd.f32 %v88, %v90
    %92 = vst [vmem:[#allocation2] sm:$0x1] %v91
    %s93 = sld [smem:[#allocation5 + $0x1]]
    %s94 = scalar_lea.smem [#allocation14], 1
    %95 = sst [smem:[%s94]] %s93
    %v96 = vld [vmem:[#allocation2] sm:$0x1]
    %s97 = scalar_lea.vmem [#allocation11], %s93
    %v98 = vld [vmem:[%s97] sm:$0x1]
    %v99 = vadd.f32 %v96, %v98
    %100 = vst [vmem:[#allocation2] sm:$0x1] %v99
    %s101 = sld [smem:[#allocation5 + $0x2]]
    %s102 = scalar_lea.smem [#allocation14], 2
    %103 = sst [smem:[%s102]] %s101
    %v104 = vld [vmem:[#allocation2] sm:$0x1]
    %s105 = scalar_lea.vmem [#allocation11], %s101
    %v106 = vld [vmem:[%s105] sm:$0x1]
    %v107 = vadd.f32 %v104, %v106
    %108 = vst [vmem:[#allocation2] sm:$0x1] %v107
    %s109 = sld [smem:[#allocation5 + $0x3]]
    %s110 = scalar_lea.smem [#allocation14], 3
    %111 = sst [smem:[%s110]] %s109
    %v112 = vld [vmem:[#allocation2] sm:$0x1]
    %s113 = scalar_lea.vmem [#allocation11], %s109
    %v114 = vld [vmem:[%s113] sm:$0x1]
    %v115 = vadd.f32 %v112, %v114
    %116 = vst [vmem:[#allocation2] sm:$0x1] %v115
    %s117 = sld [smem:[#allocation5 + $0x4]]
    %s118 = scalar_lea.smem [#allocation14], 4
    %119 = sst [smem:[%s118]] %s117
    %v120 = vld [vmem:[#allocation2] sm:$0x1]
    %s121 = scalar_lea.vmem [#allocation11], %s117
    %v122 = vld [vmem:[%s121] sm:$0x1]
    %v123 = vadd.f32 %v120, %v122
    %124 = vst [vmem:[#allocation2] sm:$0x1] %v123
    %s125 = sld [smem:[#allocation5 + $0x5]]
    %s126 = scalar_lea.smem [#allocation14], 5
    %127 = sst [smem:[%s126]] %s125
    %v128 = vld [vmem:[#allocation2] sm:$0x1]
    %s129 = scalar_lea.vmem [#allocation11], %s125
    %v130 = vld [vmem:[%s129] sm:$0x1]
    %v131 = vadd.f32 %v128, %v130
    %132 = vst [vmem:[#allocation2] sm:$0x1] %v131
    %s133 = sld [smem:[#allocation5 + $0x6]]
    %s134 = scalar_lea.smem [#allocation14], 6
    %135 = sst [smem:[%s134]] %s133
    %v136 = vld [vmem:[#allocation2] sm:$0x1]
    %s137 = scalar_lea.vmem [#allocation11], %s133
    %v138 = vld [vmem:[%s137] sm:$0x1]
    %v139 = vadd.f32 %v136, %v138
    %140 = vst [vmem:[#allocation2] sm:$0x1] %v139
    %s141 = sld [smem:[#allocation5 + $0x7]]
    %s142 = scalar_lea.smem [#allocation14], 7
    %143 = sst [smem:[%s142]] %s141
    %v144 = vld [vmem:[#allocation2] sm:$0x1]
    %s145 = scalar_lea.vmem [#allocation11], %s141
    %v146 = vld [vmem:[%s145] sm:$0x1]
    %v147 = vadd.f32 %v144, %v146
    %148 = vst [vmem:[#allocation2] sm:$0x1] %v147
    %s149 = scalar_lea.smem [#allocation4], 0
    %150 = sst [smem:[%s149]] 8
    %s151 = scalar_lea.smem [#allocation4], 1
    %152 = sst [smem:[%s151]] 0
    loop: start=0, step=1, limit=24
    $region42: #{finish_my_sentence.1} parent=1 // loop_pre_header
      _
    $region43: #{finish_my_sentence.1} parent=1 // loop_header
      %s154 = sphi 0, %s158
      %p155 = scmp.ge.s32.totalorder %s154, 24
    $region44: #{finish_my_sentence.1} parent=1 // loop_header_branch
      %157 = sbr.rel (%p155) target = $region48
    $region45: #{finish_my_sentence.1} parent=1 // loop_body
      %s159 = sld [smem:[#allocation4 + $0x1]]
      %p160 = scmp.eq.s32.totalorder %s159, 0
      // Predicated region
      $region49: #{finish_my_sentence.1} parent=45 // pred_check
        %p161 = pneg %p160
      $region50: #{finish_my_sentence.1} parent=45 // pred_check_branch
        %163 = sbr.rel (%p161) target = $region52
      $region51: #{finish_my_sentence.1} parent=45 // pred_region
        %s164 = sadd.s32 %s154, 8
        %s165 = sld [smem:[#allocation10 + %s164]]
        %v166 = vld [vmem:[#allocation2] sm:$0x1]
        %v167 = vstv %s165
        %v168 = vmul.f32 %v166, %v167
        %v169 = vld [vmem:[%s3] sm:$0x1]
        %v170 = vadd.f32 %v168, %v169
        %v171 = vtanh.pop %v170
        %v172 = vpack.c.bf16 %v171, %v171
        %v173 = vld [vmem:[#allocation12] sm:$0xff]
        %v174 = vld [vmem:[#allocation12 + $0x8] sm:$0xff]
        %v175 = vld [vmem:[#allocation12 + $0x10] sm:$0xff]
        %v176 = vld [vmem:[#allocation12 + $0x18] sm:$0xff]
        %v177 = vld [vmem:[#allocation12 + $0x20] sm:$0xff]
        %v178 = vld [vmem:[#allocation12 + $0x28] sm:$0xff]
        %v179 = vld [vmem:[#allocation12 + $0x30] sm:$0xff]
        %v180 = vld [vmem:[#allocation12 + $0x38] sm:$0xff]
        %v181 = vld [vmem:[#allocation12 + $0x40] sm:$0xff]
        %v182 = vld [vmem:[#allocation12 + $0x48] sm:$0xff]
        %v183 = vld [vmem:[#allocation12 + $0x50] sm:$0xff]
        %v184 = vld [vmem:[#allocation12 + $0x58] sm:$0xff]
        %v185 = vld [vmem:[#allocation12 + $0x60] sm:$0xff]
        %v186 = vld [vmem:[#allocation12 + $0x68] sm:$0xff]
        %v187 = vld [vmem:[#allocation12 + $0x70] sm:$0xff]
        %v188 = vld [vmem:[#allocation12 + $0x78] sm:$0xff]
        %v189 = vld [vmem:[%s5] sm:$0x3]
        %v206 = vunpack.c.l.b16 %v173
        %v207 = vunpack.c.h.b16 %v173
        %v208 = vunpack.c.l.b16 %v174
        %v209 = vunpack.c.h.b16 %v174
        %v210 = vunpack.c.l.b16 %v175
        %v211 = vunpack.c.h.b16 %v175
        %v212 = vunpack.c.l.b16 %v176
        %v213 = vunpack.c.h.b16 %v176
        %v214 = vunpack.c.l.b16 %v177
        %v215 = vunpack.c.h.b16 %v177
        %v216 = vunpack.c.l.b16 %v178
        %v217 = vunpack.c.h.b16 %v178
        %v218 = vunpack.c.l.b16 %v179
        %v219 = vunpack.c.h.b16 %v179
        %v220 = vunpack.c.l.b16 %v180
        %v221 = vunpack.c.h.b16 %v180
        %v222 = vunpack.c.l.b16 %v181
        %v223 = vunpack.c.h.b16 %v181
        %v224 = vunpack.c.l.b16 %v182
        %v225 = vunpack.c.h.b16 %v182
        %v226 = vunpack.c.l.b16 %v183
        %v227 = vunpack.c.h.b16 %v183
        %v228 = vunpack.c.l.b16 %v184
        %v229 = vunpack.c.h.b16 %v184
        %v230 = vunpack.c.l.b16 %v185
        %v231 = vunpack.c.h.b16 %v185
        %v232 = vunpack.c.l.b16 %v186
        %v233 = vunpack.c.h.b16 %v186
        %v234 = vunpack.c.l.b16 %v187
        %v235 = vunpack.c.h.b16 %v187
        %v236 = vunpack.c.l.b16 %v188
        %v237 = vunpack.c.h.b16 %v188
        %v238 = vpack.c.b16 %v208, %v206
        %v239 = vpack.c.b16 %v209, %v207
        %v240 = vpack.c.b16 %v212, %v210
        %v241 = vpack.c.b16 %v213, %v211
        %v242 = vpack.c.b16 %v216, %v214
        %v243 = vpack.c.b16 %v217, %v215
        %v244 = vpack.c.b16 %v220, %v218
        %v245 = vpack.c.b16 %v221, %v219
        %v246 = vpack.c.b16 %v224, %v222
        %v247 = vpack.c.b16 %v225, %v223
        %v248 = vpack.c.b16 %v228, %v226
        %v249 = vpack.c.b16 %v229, %v227
        %v250 = vpack.c.b16 %v232, %v230
        %v251 = vpack.c.b16 %v233, %v231
        %v252 = vpack.c.b16 %v236, %v234
        %v253 = vpack.c.b16 %v237, %v235
        %v271 = vperm.slane %v189, 0
        %v272 = vperm.slane %v189, 1
        %275 = vmatpush.bf16.msra.mxu0 %v252
        %276 = vmatpush.bf16.msra.mxu0 %v250
        %277 = vmatpush.bf16.msra.mxu0 %v248
        %278 = vmatpush.bf16.msra.mxu0 %v246
        %279 = vmatpush.bf16.msra.mxu0 %v244
        %280 = vmatpush.bf16.msra.mxu0 %v242
        %281 = vmatpush.bf16.msra.mxu0 %v240
        %282 = vmatpush.bf16.msra.mxu0 %v238
        %283 = vmatmul.bf16.gmra.mxu0 %v172
        %v284 = vpop.f32.mrf.mxu0
        %v285 = vadd.f32 %v271, %v284
        %v286 = vpop.f32.mrf.mxu0
        %287 = vdwg.mxu0
        %288 = vmatpush.bf16.msra.mxu0 %v253
        %289 = vmatpush.bf16.msra.mxu0 %v251
        %290 = vmatpush.bf16.msra.mxu0 %v249
        %291 = vmatpush.bf16.msra.mxu0 %v247
        %292 = vmatpush.bf16.msra.mxu0 %v245
        %293 = vmatpush.bf16.msra.mxu0 %v243
        %294 = vmatpush.bf16.msra.mxu0 %v241
        %295 = vmatpush.bf16.msra.mxu0 %v239
        %296 = vmatmul.bf16.gmra.mxu0 %v172
        %v297 = vpop.f32.mrf.mxu0
        %v298 = vadd.f32 %v272, %v297
        %v299 = vpop.f32.mrf.mxu0
        %300 = vdwg.mxu0
        %vm301 = vcmask 1040384
        %v302 = vsel %vm301, %v285, -inf
        %v303 = vsel %vm301, %v298, -inf
        %v304 = vmax.f32 %v302, %v303
        %305 = vmax.xlane.f32.xlu0 %v304
        %v306 = vpop.xlane.xlu0 %305
        %v307 = vlaneseq
        %v308 = vand.u32 %v307, 127
        %v309 = vadd.s32 %v308, 128
        %vm310 = vcmp.eq.f32.partialorder %v285, %v306
        %vm311 = vcmp.eq.f32.partialorder %v298, %v306
        %v312 = vsel %vm310, %v308, 256
        %v313 = vsel %vm311, %v309, 256
        %v314 = vsel %vm301, %v312, 2147483647
        %v315 = vsel %vm301, %v313, 2147483647
        %vm316 = vcmp.lt.s32.totalorder %v314, %v315
        %v317 = vsel %vm316, %v314, %v315
        %v318 = vand.u32 %v317, 65535
        %v319 = vshra.s32 %v317, 16
        %v320 = vcvt.s32.f32 %v318
        %v321 = vcvt.s32.f32 %v319
        %322 = vmin.xlane.f32.xlu0 %v321
        %v323 = vpop.xlane.xlu0 %322
        %vm324 = vcmp.eq.f32.partialorder %v321, %v323
        %v325 = vsel %vm324, %v320, inf
        %326 = vmin.xlane.f32.xlu0 %v325
        %v327 = vpop.xlane.xlu0 %326
        %v328 = vcvt.f32.s32 %v327
        %v329 = vcvt.f32.s32 %v323
        %v330 = vshll.u32 %v329, 16
        %v331 = vadd.s32 %v330, %v328
        %vm332 = vcmask 0
        %333 = vst.msk [vmem:[#allocation3] sm:$0x1] %vm332, %v331
        %s334 = sadd.s32 %s154, 9
        %335 = sst [smem:[%s149]] %s334
        %p336 = scmp.ge.s32.totalorder %s334, 32
        %v337 = vld [vmem:[#allocation3] sm:$0x1]
        %s338 = vtos %v337
        %s339 = scalar_lea.smem [#allocation14], %s164
        %340 = sst [smem:[%s339]] %s338
        %v341 = vld [vmem:[#allocation2] sm:$0x1]
        %s342 = scalar_lea.vmem [#allocation11], %s338
        %v343 = vld [vmem:[%s342] sm:$0x1]
        %v344 = vadd.f32 %v341, %v343
        %345 = vst [vmem:[#allocation2] sm:$0x1] %v344
        %p346 = scmp.eq.s32.totalorder %s338, 198
        %p347 = por %p346, %p336
        %s348 = scalar_select %p347, 1, 0
        %349 = sst [smem:[%s151]] %s348
      $region52: #{finish_my_sentence.1} parent=45 // pred_fallthru
        _
    $region46: #{finish_my_sentence.1} parent=1 // loop_footer
      %s158 = sadd.s32 1, %s154
    $region47: #{finish_my_sentence.1} parent=1 // loop_footer_branch
      %153 = sbr.rel target = $region43
    $region48: #{finish_my_sentence.1} parent=1 // loop_exit
      _
    %s350 = sld [smem:[#allocation4]]
    %s351 = scalar_lea.smem [#allocation15], 0
    %352 = sst [smem:[%s351]] %s350
    // Predicated region
    $region53: #{finish_my_sentence.1} parent=1 // pred_check
      _
    $region54: #{finish_my_sentence.1} parent=1 // pred_check_branch
      %354 = sbr.rel (0) target = $region56
    $region55: #{finish_my_sentence.1} parent=1 // pred_region
      %356 = vsyncadd [#allocation8], 0
      %s358 = sshll.u32 %s6, 4
      %s359 = int_to_ptr.hbm [resolvable:$true] %s358
      %361 = dma.smem_to_hbm [#allocation14], 16, %s359, [#allocation8]
    $region56: #{finish_my_sentence.1} parent=1 // pred_fallthru
      _
    // Predicated region
    $region57: #{finish_my_sentence.1} parent=1 // pred_check
      _
    $region58: #{finish_my_sentence.1} parent=1 // pred_check_branch
      %363 = sbr.rel (0) target = $region60
    $region59: #{finish_my_sentence.1} parent=1 // pred_region
      %365 = vsyncadd [#allocation16], 0
      %s367 = sshll.u32 %s7, 4
      %s368 = int_to_ptr.hbm [resolvable:$true] %s367
      %370 = dma.smem_to_hbm [#allocation15], 16, %s368, [#allocation16]
    $region60: #{finish_my_sentence.1} parent=1 // pred_fallthru
      _
    // Predicated region
    $region61: #{finish_my_sentence.1} parent=1 // pred_check
      _
    $region62: #{finish_my_sentence.1} parent=1 // pred_check_branch
      %372 = sbr.rel (0) target = $region64
    $region63: #{finish_my_sentence.1} parent=1 // pred_region
      %374 = dma.done [#allocation8], 16
    $region64: #{finish_my_sentence.1} parent=1 // pred_fallthru
      _
    // Predicated region
    $region65: #{finish_my_sentence.1} parent=1 // pred_check
      _
    $region66: #{finish_my_sentence.1} parent=1 // pred_check_branch
      %376 = sbr.rel (0) target = $region68
    $region67: #{finish_my_sentence.1} parent=1 // pred_region
      %378 = dma.done [#allocation16], 16
    $region68: #{finish_my_sentence.1} parent=1 // pred_fallthru
      _
    %379 = sfence
    %380 = vsyncpa [#allocation6], 1
    %381 = vsyncpa [#allocation13], 1
    %382 = vsyncpa [#allocation7], 1
    %383 = vsyncpa [#allocation8], 1
    %384 = vsyncpa [#allocation16], 1
    %385 = vsyncpa [#allocation9], 1

</llo_original>
